<compile_context>
chip_gen: v7x
topology: tpu7x:2x2x1
jax: 0.10.0
libtpu: 0.0.40
codegen_flags: <defaults>
</compile_context>

<pallas_src>
import jax
import jax.numpy as jnp
from jax.experimental import pallas as pl
from jax.experimental.pallas import tpu as pltpu

HIDDEN = 128


def _round_up(x, m):
    return (x + m - 1) // m * m


def action_encoder_kernel(x_ref, w1_ref, b1_ref, w2_ref, b2_ref, w3_ref, b3_ref, o_ref):
    # bf16 MXU operands, f32 accumulation (preferred_element_type), f32 VPU
    # epilogue (bias + ReLU) -- safe on v5e's f32-only VPU.
    h = jnp.dot(x_ref[...], w1_ref[...], preferred_element_type=jnp.float32)
    h = jnp.maximum(h + b1_ref[...], 0.0)

    h = jnp.dot(h.astype(jnp.bfloat16), w2_ref[...], preferred_element_type=jnp.float32)
    h = jnp.maximum(h + b2_ref[...], 0.0)

    h = jnp.dot(h.astype(jnp.bfloat16), w3_ref[...], preferred_element_type=jnp.float32)
    o_ref[...] = (h + b3_ref[...]).astype(o_ref.dtype)


def prepare_params(params):
    """One-time weight prep, hoisted out of the per-call forward path:
    weights -> bf16 MXU operands (halves weight HBM bytes), biases -> (1, out) f32."""
    def prep(w, b):
        return w.astype(jnp.bfloat16), b.reshape(1, -1).astype(jnp.float32)

    w1, b1 = prep(params["w1"], params["b1"])
    w2, b2 = prep(params["w2"], params["b2"])
    w3, b3 = prep(params["w3"], params["b3"])
    return {"w1": w1, "b1": b1, "w2": w2, "b2": b2, "w3": w3, "b3": b3}


def action_encoder_forward(x, prepared, *, batch_tile=4096, out_dtype=jnp.bfloat16):
    """x: (batch, ...) -> flattened to (batch, action_dim) (mirrors x.view()).
    prepared: output of prepare_params. Returns (batch, action_feat_dim) out_dtype."""
    batch = x.shape[0]
    x = x.reshape(batch, -1)  # mirrors x.view(batch_size, action_dim)
    # bf16 x: zero extra accuracy loss (MXU operand is bf16 anyway); halves the
    # x HBM read and the lane-padded (tb, 128-lane) VMEM x tile. No-op for bf16 producers.
    if x.dtype != jnp.bfloat16:
        x = x.astype(jnp.bfloat16)
    action_dim = x.shape[1]

    w1, b1 = prepared["w1"], prepared["b1"]
    w2, b2 = prepared["w2"], prepared["b2"]
    w3, b3 = prepared["w3"], prepared["b3"]
    action_feat_dim = w3.shape[1]

    # Batch tiling: big tiles amortize the ~0.35 us per-grid-step overhead.
    # No explicit batch padding -- Pallas handles the ragged last block.
    tb = min(batch_tile, _round_up(batch, 8))
    # v7x has 2 TensorCores: keep >= 2 tiles when the batch is large enough that
    # splitting beats the per-step overhead, so "parallel" actually shards.
    if batch >= 2048 and pl.cdiv(batch, tb) < 2:
        tb = _round_up(pl.cdiv(batch, 2), 8)
    grid = (pl.cdiv(batch, tb),)

    def resident(shape):
        # Constant block index -> fetched once, VMEM-resident across grid steps.
        return pl.BlockSpec(shape, lambda i: (0, 0))

    flops = 2 * batch * (action_dim * HIDDEN + HIDDEN * HIDDEN + HIDDEN * action_feat_dim)
    bytes_accessed = (
        x.size * x.dtype.itemsize                                    # bf16 x in
        + batch * action_feat_dim * jnp.dtype(out_dtype).itemsize    # out
        + (w1.size + w2.size + w3.size) * 2                          # bf16 weights
        + (b1.size + b2.size + b3.size) * 4                          # f32 biases
    )

    return pl.pallas_call(
        action_encoder_kernel,
        out_shape=jax.ShapeDtypeStruct((batch, action_feat_dim), out_dtype),
        grid=grid,
        in_specs=[
            pl.BlockSpec((tb, action_dim), lambda i: (i, 0)),  # x: batch-tiled
            resident(w1.shape), resident(b1.shape),            # weights/biases resident
            resident(w2.shape), resident(b2.shape),
            resident(w3.shape), resident(b3.shape),
        ],
        # Out block last dim == full feature dim (no pad-to-128): up to 4x fewer
        # output bytes; the kernel is HBM/DMA-bound so this beats the masked-vst cost.
        out_specs=pl.BlockSpec((tb, action_feat_dim), lambda i: (i, 0)),
        compiler_params=pltpu.CompilerParams(
            dimension_semantics=("parallel",),       # shard batch tiles across TCs (v7x)
            vmem_limit_bytes=32 * 1024 * 1024,       # headroom over v5e's 16 MiB default
        ),
        cost_estimate=pl.CostEstimate(
            flops=flops, transcendentals=0, bytes_accessed=bytes_accessed
        ),
    )(x, w1, b1, w2, b2, w3, b3)


def init_params(key, action_dim, action_feat_dim, hidden=HIDDEN):
    """Deterministic synthetic init (Kaiming-uniform-ish like nn.Linear default)."""
    ks = jax.random.split(key, 6)

    def linear(kw, kb, fan_in, fan_out):
        bound = 1.0 / jnp.sqrt(fan_in)
        w = jax.random.uniform(kw, (fan_in, fan_out), jnp.float32, -bound, bound)
        b = jax.random.uniform(kb, (fan_out,), jnp.float32, -bound, bound)
        return w, b

    w1, b1 = linear(ks[0], ks[1], action_dim, hidden)
    w2, b2 = linear(ks[2], ks[3], hidden, hidden)
    w3, b3 = linear(ks[4], ks[5], hidden, action_feat_dim)
    return {"w1": w1, "b1": b1, "w2": w2, "b2": b2, "w3": w3, "b3": b3}


def reference_forward(x, p):
    h = jnp.maximum(x @ p["w1"] + p["b1"], 0.0)
    h = jnp.maximum(h @ p["w2"] + p["b2"], 0.0)
    return h @ p["w3"] + p["b3"]


if __name__ == "__main__":
    key = jax.random.PRNGKey(0)
    k_params, k_x, k_params2, k_x2 = jax.random.split(key, 4)

    # --- Case 1: small latency-style batch (module's typical use), bf16 output ---
    action_dim, action_feat_dim, batch = 8, 32, 2
    params = init_params(k_params, action_dim, action_feat_dim)
    prepared = prepare_params(params)  # weight prep hoisted out of the forward
    x = jax.random.normal(k_x, (batch, action_dim), jnp.float32)

    out = action_encoder_forward(x, prepared)
    out = jax.block_until_ready(out)
    ref = reference_forward(x, params)  # f32 reference; kernel uses bf16 MXU operands
    assert out.shape == (batch, action_feat_dim)
    assert jnp.allclose(out.astype(jnp.float32), ref, atol=5e-2, rtol=5e-2)

    # --- Case 2: ragged multi-tile batch, non-128 feature dim, f32 output path ---
    batch2, feat2 = 300, 48
    params2 = init_params(k_params2, action_dim, feat2)
    prepared2 = prepare_params(params2)
    x2 = jax.random.normal(k_x2, (batch2, action_dim), jnp.float32)

    out2 = action_encoder_forward(x2, prepared2, batch_tile=128, out_dtype=jnp.float32)
    out2 = jax.block_until_ready(out2)
    ref2 = reference_forward(x2, params2)
    assert out2.shape == (batch2, feat2)
    assert jnp.allclose(out2, ref2, atol=5e-2, rtol=5e-2)

    print("KERNEL_OK")
</pallas_src>

<mosaic_0001>
module attributes {stable_mosaic.version = 11 : i64} {
  func.func @action_encoder_kernel(%arg0: i32, %arg1: memref<8x8xbf16, #tpu.memory_space<vmem>>, %arg2: memref<8x128xbf16, #tpu.memory_space<vmem>>, %arg3: memref<1x128xf32, #tpu.memory_space<vmem>>, %arg4: memref<128x128xbf16, #tpu.memory_space<vmem>>, %arg5: memref<1x128xf32, #tpu.memory_space<vmem>>, %arg6: memref<128x32xbf16, #tpu.memory_space<vmem>>, %arg7: memref<1x32xf32, #tpu.memory_space<vmem>>, %arg8: memref<8x32xbf16, #tpu.memory_space<vmem>>) attributes {dimension_semantics = [#tpu.dimension_semantics<parallel>], iteration_bounds = array<i64: 1>, scalar_prefetch = 0 : i64, scratch_operands = 0 : i64, tpu.core_type = #tpu.core_type<tc>, window_params = [{transform_indices = @transform_0, window_bounds = array<i64: 8, 8>}, {pipeline_mode = #tpu.pipeline_mode<synchronous>, transform_indices = @transform_1, window_bounds = array<i64: 8, 128>}, {pipeline_mode = #tpu.pipeline_mode<synchronous>, transform_indices = @transform_2, window_bounds = array<i64: 1, 128>}, {pipeline_mode = #tpu.pipeline_mode<synchronous>, transform_indices = @transform_3, window_bounds = array<i64: 128, 128>}, {pipeline_mode = #tpu.pipeline_mode<synchronous>, transform_indices = @transform_4, window_bounds = array<i64: 1, 128>}, {pipeline_mode = #tpu.pipeline_mode<synchronous>, transform_indices = @transform_5, window_bounds = array<i64: 128, 32>}, {pipeline_mode = #tpu.pipeline_mode<synchronous>, transform_indices = @transform_6, window_bounds = array<i64: 1, 32>}, {transform_indices = @transform_7, window_bounds = array<i64: 8, 32>}]} {
    %c0 = arith.constant 0 : index
    %c0_0 = arith.constant 0 : index
    %0 = vector.load %arg1[%c0, %c0_0] : memref<8x8xbf16, #tpu.memory_space<vmem>>, vector<8x8xbf16>
    %c0_1 = arith.constant 0 : index
    %c0_2 = arith.constant 0 : index
    %1 = vector.load %arg2[%c0_1, %c0_2] : memref<8x128xbf16, #tpu.memory_space<vmem>>, vector<8x128xbf16>
    %cst = arith.constant dense<0.000000e+00> : vector<8x128xf32>
    %2 = tpu.matmul %0, %1, %cst {dimension_numbers = #tpu.dot_dimension_numbers<[1], [0], [0], [1], [0, 0, 1, 1], [], []>} : vector<8x8xbf16>, vector<8x128xbf16>, vector<8x128xf32> -> vector<8x128xf32>
    %c0_3 = arith.constant 0 : index
    %c0_4 = arith.constant 0 : index
    %3 = vector.load %arg3[%c0_3, %c0_4] : memref<1x128xf32, #tpu.memory_space<vmem>>, vector<1x128xf32>
    %4 = vector.broadcast %3 : vector<1x128xf32> to vector<8x128xf32>
    %5 = arith.addf %2, %4 : vector<8x128xf32>
    %cst_5 = arith.constant 0.000000e+00 : f32
    %6 = vector.broadcast %cst_5 : f32 to vector<8x128xf32>
    %7 = arith.maximumf %5, %6 : vector<8x128xf32>
    %8 = arith.truncf %7 : vector<8x128xf32> to vector<8x128xbf16>
    %c0_6 = arith.constant 0 : index
    %c0_7 = arith.constant 0 : index
    %9 = vector.load %arg4[%c0_6, %c0_7] : memref<128x128xbf16, #tpu.memory_space<vmem>>, vector<128x128xbf16>
    %cst_8 = arith.constant dense<0.000000e+00> : vector<8x128xf32>
    %10 = tpu.matmul %8, %9, %cst_8 {dimension_numbers = #tpu.dot_dimension_numbers<[1], [0], [0], [1], [0, 0, 1, 1], [], []>} : vector<8x128xbf16>, vector<128x128xbf16>, vector<8x128xf32> -> vector<8x128xf32>
    %c0_9 = arith.constant 0 : index
    %c0_10 = arith.constant 0 : index
    %11 = vector.load %arg5[%c0_9, %c0_10] : memref<1x128xf32, #tpu.memory_space<vmem>>, vector<1x128xf32>
    %12 = vector.broadcast %11 : vector<1x128xf32> to vector<8x128xf32>
    %13 = arith.addf %10, %12 : vector<8x128xf32>
    %cst_11 = arith.constant 0.000000e+00 : f32
    %14 = vector.broadcast %cst_11 : f32 to vector<8x128xf32>
    %15 = arith.maximumf %13, %14 : vector<8x128xf32>
    %16 = arith.truncf %15 : vector<8x128xf32> to vector<8x128xbf16>
    %c0_12 = arith.constant 0 : index
    %c0_13 = arith.constant 0 : index
    %17 = vector.load %arg6[%c0_12, %c0_13] : memref<128x32xbf16, #tpu.memory_space<vmem>>, vector<128x32xbf16>
    %cst_14 = arith.constant dense<0.000000e+00> : vector<8x32xf32>
    %18 = tpu.matmul %16, %17, %cst_14 {dimension_numbers = #tpu.dot_dimension_numbers<[1], [0], [0], [1], [0, 0, 1, 1], [], []>} : vector<8x128xbf16>, vector<128x32xbf16>, vector<8x32xf32> -> vector<8x32xf32>
    %c0_15 = arith.constant 0 : index
    %c0_16 = arith.constant 0 : index
    %19 = vector.load %arg7[%c0_15, %c0_16] : memref<1x32xf32, #tpu.memory_space<vmem>>, vector<1x32xf32>
    %20 = vector.broadcast %19 : vector<1x32xf32> to vector<8x32xf32>
    %21 = arith.addf %18, %20 : vector<8x32xf32>
    %22 = arith.truncf %21 : vector<8x32xf32> to vector<8x32xbf16>
    %c0_17 = arith.constant 0 : index
    %c0_18 = arith.constant 0 : index
    %23 = vector.load %arg8[%c0_17, %c0_18] : memref<8x32xbf16, #tpu.memory_space<vmem>>, vector<8x32xbf16>
    tpu.vector_store %arg8[%c0_17, %c0_18], %22 {strides = array<i32>} : memref<8x32xbf16, #tpu.memory_space<vmem>>, vector<8x32xbf16>,
    return
  }
  func.func @transform_0(%arg0: i32) -> (i32, i32) {
    %c0_i32 = arith.constant 0 : i32
    %c0_i32_0 = arith.constant 0 : i32
    return %arg0, %c0_i32 : i32, i32
  }
  func.func @transform_1(%arg0: i32) -> (i32, i32) {
    %c0_i32 = arith.constant 0 : i32
    %c0_i32_0 = arith.constant 0 : i32
    %c0_i32_1 = arith.constant 0 : i32
    return %c0_i32, %c0_i32_0 : i32, i32
  }
  func.func @transform_2(%arg0: i32) -> (i32, i32) {
    %c0_i32 = arith.constant 0 : i32
    %c0_i32_0 = arith.constant 0 : i32
    %c0_i32_1 = arith.constant 0 : i32
    return %c0_i32, %c0_i32_0 : i32, i32
  }
  func.func @transform_3(%arg0: i32) -> (i32, i32) {
    %c0_i32 = arith.constant 0 : i32
    %c0_i32_0 = arith.constant 0 : i32
    %c0_i32_1 = arith.constant 0 : i32
    return %c0_i32, %c0_i32_0 : i32, i32
  }
  func.func @transform_4(%arg0: i32) -> (i32, i32) {
    %c0_i32 = arith.constant 0 : i32
    %c0_i32_0 = arith.constant 0 : i32
    %c0_i32_1 = arith.constant 0 : i32
    return %c0_i32, %c0_i32_0 : i32, i32
  }
  func.func @transform_5(%arg0: i32) -> (i32, i32) {
    %c0_i32 = arith.constant 0 : i32
    %c0_i32_0 = arith.constant 0 : i32
    %c0_i32_1 = arith.constant 0 : i32
    return %c0_i32, %c0_i32_0 : i32, i32
  }
  func.func @transform_6(%arg0: i32) -> (i32, i32) {
    %c0_i32 = arith.constant 0 : i32
    %c0_i32_0 = arith.constant 0 : i32
    %c0_i32_1 = arith.constant 0 : i32
    return %c0_i32, %c0_i32_0 : i32, i32
  }
  func.func @transform_7(%arg0: i32) -> (i32, i32) {
    %c0_i32 = arith.constant 0 : i32
    %c0_i32_0 = arith.constant 0 : i32
    return %arg0, %c0_i32 : i32, i32
  }
}

</mosaic_0001>

<llo_original>
// kernel: tpu_custom_call.1
$region0: #{tpu_custom_call.1}
  #allocation0 [shape = 'u32[]', space=smem, size = 0x4, offset = 0x4, fixed_abs, tag = 'smem constant byte address 0x4 - core index']
  #allocation1 [shape = 'u32[144,128]{1,0:T(1,128)}', space=vmem, size = 0x12000, scoped, tag = 'internal scratch']
  %s0 = inlined_call_operand.vmem [shape: bf16[2,8], index: 0, kind: input, shape index: {}]
  %s1 = inlined_call_operand.vmem [shape: bf16[8,128], index: 1, kind: input, shape index: {}]
  %s2 = inlined_call_operand.vmem [shape: f32[1,128], index: 2, kind: input, shape index: {}]
  %s3 = inlined_call_operand.vmem [shape: bf16[128,128], index: 3, kind: input, shape index: {}]
  %s4 = inlined_call_operand.vmem [shape: f32[1,128], index: 4, kind: input, shape index: {}]
  %s5 = inlined_call_operand.vmem [shape: bf16[128,32], index: 5, kind: input, shape index: {}]
  %s6 = inlined_call_operand.vmem [shape: f32[1,32], index: 6, kind: input, shape index: {}]
  %s7 = inlined_call_operand.hbm [shape: bf16[2,32], index: 7, kind: output, shape index: {}]
  %s8 = sld [smem:[#allocation0]]
  $region38: #{tpu_custom_call.1} parent=0
    _
  %s10 = ssub.s32 1, %s8
  %s11 = scalar_select 0, %s10, %s8
  $region1: #{tpu_custom_call.1} parent=0
    #allocation2 [shape = 'u8[2048]{0}', space=vmem, size = 0x800, scoped, tag = 'output window, operand 0, single buffered']
    #allocation3 [shape = 's32[1]{0}', space=sflag, size = 0x4, scoped, tag = 'scoped memory for tpu_custom_call.1']
    %12 = vsyncpa [#allocation3], 0
    // Predicated region
    $region2: #{tpu_custom_call.1} parent=1 // pred_check
      _
    $region3: #{tpu_custom_call.1} parent=1 // pred_check_branch
      %14 = sbr.rel (0) target = $region5
    $region4: #{tpu_custom_call.1} parent=1 // pred_region
      _
    $region5: #{tpu_custom_call.1} parent=1 // pred_fallthru
      _
    // Predicated region
    $region6: #{tpu_custom_call.1} parent=1 // pred_check
      _
    $region7: #{tpu_custom_call.1} parent=1 // pred_check_branch
      %16 = sbr.rel (0) target = $region9
    $region8: #{tpu_custom_call.1} parent=1 // pred_region
      _
    $region9: #{tpu_custom_call.1} parent=1 // pred_fallthru
      _
    // Predicated region
    $region10: #{tpu_custom_call.1} parent=1 // pred_check
      _
    $region11: #{tpu_custom_call.1} parent=1 // pred_check_branch
      %18 = sbr.rel (0) target = $region13
    $region12: #{tpu_custom_call.1} parent=1 // pred_region
      _
    $region13: #{tpu_custom_call.1} parent=1 // pred_fallthru
      _
    // Predicated region
    $region14: #{tpu_custom_call.1} parent=1 // pred_check
      _
    $region15: #{tpu_custom_call.1} parent=1 // pred_check_branch
      %20 = sbr.rel (0) target = $region17
    $region16: #{tpu_custom_call.1} parent=1 // pred_region
      _
    $region17: #{tpu_custom_call.1} parent=1 // pred_fallthru
      _
    // Predicated region
    $region18: #{tpu_custom_call.1} parent=1 // pred_check
      _
    $region19: #{tpu_custom_call.1} parent=1 // pred_check_branch
      %22 = sbr.rel (0) target = $region21
    $region20: #{tpu_custom_call.1} parent=1 // pred_region
      _
    $region21: #{tpu_custom_call.1} parent=1 // pred_fallthru
      _
    // Predicated region
    $region22: #{tpu_custom_call.1} parent=1 // pred_check
      _
    $region23: #{tpu_custom_call.1} parent=1 // pred_check_branch
      %24 = sbr.rel (0) target = $region25
    $region24: #{tpu_custom_call.1} parent=1 // pred_region
      _
    $region25: #{tpu_custom_call.1} parent=1 // pred_fallthru
      _
    // Predicated region
    $region26: #{tpu_custom_call.1} parent=1 // pred_check
      _
    $region27: #{tpu_custom_call.1} parent=1 // pred_check_branch
      %26 = sbr.rel (0) target = $region29
    $region28: #{tpu_custom_call.1} parent=1 // pred_region
      _
    $region29: #{tpu_custom_call.1} parent=1 // pred_fallthru
      _
    %v28 = vld [vmem:[%s0] sm:$0x1]
    %v29 = vld [vmem:[%s0 + $0x1] sm:$0x1]
    %v30 = vld [vmem:[%s0 + $0x2] sm:$0x1]
    %v31 = vld [vmem:[%s0 + $0x3] sm:$0x1]
    %v32 = vld [vmem:[%s1] sm:$0xf]
    %v33 = vld [vmem:[%s2] sm:$0x1]
    %v35 = vlaneseq
    %v36 = vshrl.u32 %v35, 7
    %v37 = vsub.s32 0, %v36
    %v38 = vrot.slane %v33, %v37
    %v44 = vcombine.low %v28, %v29
    %v45 = vcombine.low %v30, %v31
    %v47 = vunpack.c.l.s4 1966171168
    %v48 = vunpack.c.0.s8 %v47
    %v49 = vlaneseq
    %v50 = vshrl.u32 %v49, 7
    %v51 = vsub.s32 %v48, %v50
    %v52 = vrot.slane %v44, %v51
    %v54 = vunpack.c.l.s4 1966171168
    %v55 = vunpack.c.0.s8 %v54
    %v56 = vlaneseq
    %v57 = vshrl.u32 %v56, 7
    %v58 = vsub.s32 %v55, %v57
    %v59 = vrot.slane %v45, %v58
    %v60 = vcombine.low %v52, %v59
    %v62 = vunpack.c.l.s4 1966171168
    %v63 = vunpack.c.0.s8 %v62
    %v64 = vlaneseq
    %v65 = vshrl.u32 %v64, 7
    %v66 = vsub.s32 %v63, %v65
    %v67 = vrot.slane %v60, %v66
    %vm68 = vcmask 64512
    %v70 = vsel %vm68, %v67, 0
    %vm72 = vcmask 1043456
    %v74 = vsel %vm72, %v32, 0
    %76 = vmatprep.subr.bf16.mxu0 0
    %77 = vmatpush1.bf16.msra.mxu0 %v74
    %78 = vmatprep.subr.bf16.mxu0 0
    %79 = vmatpush1.bf16.msra.mxu0 0
    %80 = vmatprep.subr.bf16.mxu0 0
    %81 = vmatpush1.bf16.msra.mxu0 0
    %82 = vmatprep.subr.bf16.mxu0 0
    %83 = vmatpush1.bf16.msra.mxu0 0
    %84 = vmatprep.subr.bf16.mxu0 0
    %85 = vmatpush1.bf16.msra.mxu0 0
    %86 = vmatprep.subr.bf16.mxu0 0
    %87 = vmatpush1.bf16.msra.mxu0 0
    %88 = vmatprep.subr.bf16.mxu0 0
    %89 = vmatpush1.bf16.msra.mxu0 0
    %90 = vmatprep.subr.bf16.mxu0 0
    %91 = vmatpush1.bf16.msra.mxu0 0
    %92 = vmatprep.subr.bf16.mxu0 0
    %93 = vmatpush1.bf16.msra.mxu0 0
    %94 = vmatprep.subr.bf16.mxu0 0
    %95 = vmatpush1.bf16.msra.mxu0 0
    %96 = vmatprep.subr.bf16.mxu0 0
    %97 = vmatpush1.bf16.msra.mxu0 0
    %98 = vmatprep.subr.bf16.mxu0 0
    %99 = vmatpush1.bf16.msra.mxu0 0
    %100 = vmatprep.subr.bf16.mxu0 0
    %101 = vmatpush1.bf16.msra.mxu0 0
    %102 = vmatprep.subr.bf16.mxu0 0
    %103 = vmatpush1.bf16.msra.mxu0 0
    %104 = vmatprep.subr.bf16.mxu0 0
    %105 = vmatpush1.bf16.msra.mxu0 0
    %106 = vmatprep.subr.bf16.mxu0 0
    %107 = vmatpush1.bf16.msra.mxu0 0
    %108 = vmatprep.mubr.bf16.mxu0 0
    %109 = vmatmul.mubr.bf16.gmra.mrb[0].mxu0 %v70
    %v110 = vpop.f32.mrb[0].mxu0
    %v111 = vadd.f32 %v38, %v110
    %v112 = vpop.f32.mrb[0].mxu0
    %v113 = vpop.f32.mrb[0].mxu0
    %v114 = vpop.f32.mrb[0].mxu0
    %115 = vdwg.mxu0
    %v116 = vmax.f32 %v111, 0.0
    %v117 = vpack.c.bf16 %v116, %v116
    %v118 = vld [vmem:[%s3] sm:$0xf]
    %v119 = vld [vmem:[%s3 + $0x4] sm:$0xf]
    %v120 = vld [vmem:[%s3 + $0x8] sm:$0xf]
    %v121 = vld [vmem:[%s3 + $0xc] sm:$0xf]
    %v122 = vld [vmem:[%s3 + $0x10] sm:$0xf]
    %v123 = vld [vmem:[%s3 + $0x14] sm:$0xf]
    %v124 = vld [vmem:[%s3 + $0x18] sm:$0xf]
    %v125 = vld [vmem:[%s3 + $0x1c] sm:$0xf]
    %v126 = vld [vmem:[%s3 + $0x20] sm:$0xf]
    %v127 = vld [vmem:[%s3 + $0x24] sm:$0xf]
    %v128 = vld [vmem:[%s3 + $0x28] sm:$0xf]
    %v129 = vld [vmem:[%s3 + $0x2c] sm:$0xf]
    %v130 = vld [vmem:[%s3 + $0x30] sm:$0xf]
    %v131 = vld [vmem:[%s3 + $0x34] sm:$0xf]
    %v132 = vld [vmem:[%s3 + $0x38] sm:$0xf]
    %v133 = vld [vmem:[%s3 + $0x3c] sm:$0xf]
    %v134 = vld [vmem:[%s4] sm:$0x1]
    %v136 = vlaneseq
    %v137 = vshrl.u32 %v136, 7
    %v138 = vsub.s32 0, %v137
    %v139 = vrot.slane %v134, %v138
    %v157 = vunpack.c.l.b16 %v118
    %v158 = vunpack.c.l.b16 %v119
    %v159 = vunpack.c.l.b16 %v120
    %v160 = vunpack.c.l.b16 %v121
    %v161 = vunpack.c.l.b16 %v122
    %v162 = vunpack.c.l.b16 %v123
    %v163 = vunpack.c.l.b16 %v124
    %v164 = vunpack.c.l.b16 %v125
    %v165 = vunpack.c.l.b16 %v126
    %v166 = vunpack.c.l.b16 %v127
    %v167 = vunpack.c.l.b16 %v128
    %v168 = vunpack.c.l.b16 %v129
    %v169 = vunpack.c.l.b16 %v130
    %v170 = vunpack.c.l.b16 %v131
    %v171 = vunpack.c.l.b16 %v132
    %v172 = vunpack.c.l.b16 %v133
    %v173 = vpack.c.b16 %v158, %v157
    %v174 = vpack.c.b16 %v160, %v159
    %v175 = vpack.c.b16 %v162, %v161
    %v176 = vpack.c.b16 %v164, %v163
    %v177 = vpack.c.b16 %v166, %v165
    %v178 = vpack.c.b16 %v168, %v167
    %v179 = vpack.c.b16 %v170, %v169
    %v180 = vpack.c.b16 %v172, %v171
    %189 = vmatprep.subr.bf16.mxu0 0
    %190 = vmatpush1.bf16.msra.mxu0 %v173
    %191 = vmatprep.subr.bf16.mxu0 0
    %192 = vmatpush1.bf16.msra.mxu0 %v174
    %193 = vmatprep.subr.bf16.mxu0 0
    %194 = vmatpush1.bf16.msra.mxu0 %v175
    %195 = vmatprep.subr.bf16.mxu0 0
    %196 = vmatpush1.bf16.msra.mxu0 %v176
    %197 = vmatprep.subr.bf16.mxu0 0
    %198 = vmatpush1.bf16.msra.mxu0 %v177
    %199 = vmatprep.subr.bf16.mxu0 0
    %200 = vmatpush1.bf16.msra.mxu0 %v178
    %201 = vmatprep.subr.bf16.mxu0 0
    %202 = vmatpush1.bf16.msra.mxu0 %v179
    %203 = vmatprep.subr.bf16.mxu0 0
    %204 = vmatpush1.bf16.msra.mxu0 %v180
    %205 = vmatprep.subr.bf16.mxu0 0
    %206 = vmatpush1.bf16.msra.mxu0 0
    %207 = vmatprep.subr.bf16.mxu0 0
    %208 = vmatpush1.bf16.msra.mxu0 0
    %209 = vmatprep.subr.bf16.mxu0 0
    %210 = vmatpush1.bf16.msra.mxu0 0
    %211 = vmatprep.subr.bf16.mxu0 0
    %212 = vmatpush1.bf16.msra.mxu0 0
    %213 = vmatprep.subr.bf16.mxu0 0
    %214 = vmatpush1.bf16.msra.mxu0 0
    %215 = vmatprep.subr.bf16.mxu0 0
    %216 = vmatpush1.bf16.msra.mxu0 0
    %217 = vmatprep.subr.bf16.mxu0 0
    %218 = vmatpush1.bf16.msra.mxu0 0
    %219 = vmatprep.subr.bf16.mxu0 0
    %220 = vmatpush1.bf16.msra.mxu0 0
    %221 = vmatprep.mubr.bf16.mxu0 0
    %222 = vmatmul.mubr.bf16.gmra.mrb[0].mxu0 %v117
    %v223 = vpop.f32.mrb[0].mxu0
    %v224 = vadd.f32 %v139, %v223
    %v225 = vpop.f32.mrb[0].mxu0
    %v226 = vpop.f32.mrb[0].mxu0
    %v227 = vpop.f32.mrb[0].mxu0
    %228 = vdwg.mxu0
    %v229 = vmax.f32 %v224, 0.0
    %v230 = vpack.c.bf16 %v229, %v229
    %v231 = vld [vmem:[%s5] sm:$0xf]
    %v232 = vld [vmem:[%s5 + $0x4] sm:$0xf]
    %v233 = vld [vmem:[%s5 + $0x8] sm:$0xf]
    %v234 = vld [vmem:[%s5 + $0xc] sm:$0xf]
    %v235 = vld [vmem:[%s5 + $0x10] sm:$0xf]
    %v236 = vld [vmem:[%s5 + $0x14] sm:$0xf]
    %v237 = vld [vmem:[%s5 + $0x18] sm:$0xf]
    %v238 = vld [vmem:[%s5 + $0x1c] sm:$0xf]
    %v239 = vld [vmem:[%s5 + $0x20] sm:$0xf]
    %v240 = vld [vmem:[%s5 + $0x24] sm:$0xf]
    %v241 = vld [vmem:[%s5 + $0x28] sm:$0xf]
    %v242 = vld [vmem:[%s5 + $0x2c] sm:$0xf]
    %v243 = vld [vmem:[%s5 + $0x30] sm:$0xf]
    %v244 = vld [vmem:[%s5 + $0x34] sm:$0xf]
    %v245 = vld [vmem:[%s5 + $0x38] sm:$0xf]
    %v246 = vld [vmem:[%s5 + $0x3c] sm:$0xf]
    %v247 = vld [vmem:[%s6] sm:$0x1]
    %v249 = vlaneseq
    %v250 = vshrl.u32 %v249, 7
    %v251 = vsub.s32 0, %v250
    %v252 = vrot.slane %v247, %v251
    %v270 = vunpack.c.l.b16 %v231
    %v271 = vunpack.c.l.b16 %v232
    %v272 = vunpack.c.l.b16 %v233
    %v273 = vunpack.c.l.b16 %v234
    %v274 = vunpack.c.l.b16 %v235
    %v275 = vunpack.c.l.b16 %v236
    %v276 = vunpack.c.l.b16 %v237
    %v277 = vunpack.c.l.b16 %v238
    %v278 = vunpack.c.l.b16 %v239
    %v279 = vunpack.c.l.b16 %v240
    %v280 = vunpack.c.l.b16 %v241
    %v281 = vunpack.c.l.b16 %v242
    %v282 = vunpack.c.l.b16 %v243
    %v283 = vunpack.c.l.b16 %v244
    %v284 = vunpack.c.l.b16 %v245
    %v285 = vunpack.c.l.b16 %v246
    %v286 = vpack.c.b16 %v271, %v270
    %v287 = vpack.c.b16 %v273, %v272
    %v288 = vpack.c.b16 %v275, %v274
    %v289 = vpack.c.b16 %v277, %v276
    %v290 = vpack.c.b16 %v279, %v278
    %v291 = vpack.c.b16 %v281, %v280
    %v292 = vpack.c.b16 %v283, %v282
    %v293 = vpack.c.b16 %v285, %v284
    %302 = vmatprep.subr.bf16.mxu0 0
    %303 = vmatpush1.bf16.msra.mxu0 %v286
    %304 = vmatprep.subr.bf16.mxu0 0
    %305 = vmatpush1.bf16.msra.mxu0 %v287
    %306 = vmatprep.subr.bf16.mxu0 0
    %307 = vmatpush1.bf16.msra.mxu0 %v288
    %308 = vmatprep.subr.bf16.mxu0 0
    %309 = vmatpush1.bf16.msra.mxu0 %v289
    %310 = vmatprep.subr.bf16.mxu0 0
    %311 = vmatpush1.bf16.msra.mxu0 %v290
    %312 = vmatprep.subr.bf16.mxu0 0
    %313 = vmatpush1.bf16.msra.mxu0 %v291
    %314 = vmatprep.subr.bf16.mxu0 0
    %315 = vmatpush1.bf16.msra.mxu0 %v292
    %316 = vmatprep.subr.bf16.mxu0 0
    %317 = vmatpush1.bf16.msra.mxu0 %v293
    %318 = vmatprep.subr.bf16.mxu0 0
    %319 = vmatpush1.bf16.msra.mxu0 0
    %320 = vmatprep.subr.bf16.mxu0 0
    %321 = vmatpush1.bf16.msra.mxu0 0
    %322 = vmatprep.subr.bf16.mxu0 0
    %323 = vmatpush1.bf16.msra.mxu0 0
    %324 = vmatprep.subr.bf16.mxu0 0
    %325 = vmatpush1.bf16.msra.mxu0 0
    %326 = vmatprep.subr.bf16.mxu0 0
    %327 = vmatpush1.bf16.msra.mxu0 0
    %328 = vmatprep.subr.bf16.mxu0 0
    %329 = vmatpush1.bf16.msra.mxu0 0
    %330 = vmatprep.subr.bf16.mxu0 0
    %331 = vmatpush1.bf16.msra.mxu0 0
    %332 = vmatprep.subr.bf16.mxu0 0
    %333 = vmatpush1.bf16.msra.mxu0 0
    %334 = vmatprep.mubr.bf16.mxu0 0
    %335 = vmatmul.mubr.bf16.gmra.mrb[0].mxu0 %v230
    %v336 = vpop.f32.mrb[0].mxu0
    %v337 = vadd.f32 %v252, %v336
    %v338 = vpop.f32.mrb[0].mxu0
    %v339 = vpop.f32.mrb[0].mxu0
    %v340 = vpop.f32.mrb[0].mxu0
    %341 = vdwg.mxu0
    %v342 = vpack.c.bf16 %v337, %v337
    %v345 = vunpack.c.l.s4 1966171168
    %v346 = vunpack.c.0.s8 %v345
    %v347 = vlaneseq
    %v348 = vshrl.u32 %v347, 7
    %v349 = vsub.s32 %v346, %v348
    %v350 = vrot.slane %v342, %v349
    %v351 = vcombine.high %v350, %v350
    %v353 = vunpack.c.l.s4 1966171168
    %v354 = vunpack.c.0.s8 %v353
    %v355 = vlaneseq
    %v356 = vshrl.u32 %v355, 7
    %v357 = vsub.s32 %v354, %v356
    %v358 = vrot.slane %v350, %v357
    %v360 = vunpack.c.l.s4 1966171168
    %v361 = vunpack.c.0.s8 %v360
    %v362 = vlaneseq
    %v363 = vshrl.u32 %v362, 7
    %v364 = vsub.s32 %v361, %v363
    %v365 = vrot.slane %v351, %v364
    %v366 = vcombine.high %v358, %v358
    %v367 = vcombine.high %v365, %v365
    %vm372 = vcmask 253952
    %373 = vst.msk [vmem:[#allocation2] sm:$0x1] %vm372, %v358
    %374 = vst.msk [vmem:[#allocation2 + $0x1] sm:$0x1] %vm372, %v365
    %375 = vst.msk [vmem:[#allocation2 + $0x2] sm:$0x1] %vm372, %v366
    %376 = vst.msk [vmem:[#allocation2 + $0x3] sm:$0x1] %vm372, %v367
    // Predicated region
    $region30: #{tpu_custom_call.1} parent=1 // pred_check
      _
    $region31: #{tpu_custom_call.1} parent=1 // pred_check_branch
      %378 = sbr.rel (0) target = $region33
    $region32: #{tpu_custom_call.1} parent=1 // pred_region
      %s380 = ssub.s32 64, 16
      %381 = vsyncadd [#allocation3], %s380
      %s382 = sshll.u32 [#allocation2], 4
      %s383 = int_to_ptr.vmem [resolvable:$true] %s382
      %388 = dma.vmem_to_hbm [thread:$0]  %s383, 16, %s7, [#allocation3], 16, 16, 1
    $region33: #{tpu_custom_call.1} parent=1 // pred_fallthru
      _
    // Predicated region
    $region34: #{tpu_custom_call.1} parent=1 // pred_check
      _
    $region35: #{tpu_custom_call.1} parent=1 // pred_check_branch
      %390 = sbr.rel (0) target = $region37
    $region36: #{tpu_custom_call.1} parent=1 // pred_region
      %391 = dma.done [#allocation3], 64
    $region37: #{tpu_custom_call.1} parent=1 // pred_fallthru
      _
    %392 = vsyncpa [#allocation3], 1

</llo_original>
